<compile_context>
chip_gen: v7x
topology: tpu7x:2x2x1
jax: 0.10.0
libtpu: 0.0.40
codegen_flags: <defaults>
</compile_context>

<pallas_src>
import functools

import jax
import jax.numpy as jnp
from jax.experimental import pallas as pl
from jax.experimental.pallas import tpu as pltpu


def _round_up(x, m):
    return (x + m - 1) // m * m


def byol_forward_kernel(v_ref, vp_ref,
                        w_enc_ref, b_enc_ref,
                        w_proj_ref, b_proj_ref,
                        w_pred_ref, b_pred_ref,
                        loss_ref,
                        *, batch, tile_m, num_tiles):
    """One batch tile of the BYOL forward pass.

    Online branch:  q = predictor(projector(encoder(v)))
    Target branch:  z = projector(encoder(v'))        (stop-grad in the reference)

    Target weights are byte-identical to the online ones at construction time
    (target = deepcopy(online_common)), so both branches reuse the same
    VMEM-resident weight blocks (deduplicated DMA / VMEM).
    """
    eps = 1e-12            # torch.nn.functional.normalize default (p=2, dim=1)
    eps2 = eps * eps       # clamp on the sum-of-squares == clamp on the norm

    # ----- online branch: encoder -> projector -> predictor on view v -----
    h_on = jnp.dot(v_ref[...], w_enc_ref[...],
                   preferred_element_type=jnp.float32) + b_enc_ref[...]
    p_on = jnp.dot(h_on.astype(jnp.bfloat16), w_proj_ref[...],
                   preferred_element_type=jnp.float32) + b_proj_ref[...]
    q = jnp.dot(p_on.astype(jnp.bfloat16), w_pred_ref[...],
                preferred_element_type=jnp.float32) + b_pred_ref[...]

    # ----- target branch: encoder -> projector on view v' (no predictor) -----
    h_tg = jnp.dot(vp_ref[...], w_enc_ref[...],
                   preferred_element_type=jnp.float32) + b_enc_ref[...]
    z_tg = jnp.dot(h_tg.astype(jnp.bfloat16), w_proj_ref[...],
                   preferred_element_type=jnp.float32) + b_proj_ref[...]

    # ----- L2 normalize both branches (rsqrt -> EUP slot; padded lanes are zero) -----
    pred = q * jax.lax.rsqrt(
        jnp.maximum(jnp.sum(q * q, axis=-1, keepdims=True), eps2))
    z = z_tg * jax.lax.rsqrt(
        jnp.maximum(jnp.sum(z_tg * z_tg, axis=-1, keepdims=True), eps2))

    # ----- nn.MSELoss(reduction='sum'); only the last tile can hold padded rows -----
    diff = pred - z

    def full_loss():
        loss_ref[0, 0] = jnp.sum(diff * diff)

    def masked_loss():
        valid = batch - (num_tiles - 1) * tile_m       # real rows in the last tile
        row = jax.lax.broadcasted_iota(jnp.int32, diff.shape, 0)
        d = jnp.where(row < valid, diff, 0.0)
        loss_ref[0, 0] = jnp.sum(d * d)

    if batch == num_tiles * tile_m:        # compile-time: no batch padding anywhere
        full_loss()
    elif num_tiles == 1:                   # single tile -> it is the "last" tile
        masked_loss()
    else:
        is_last = pl.program_id(0) == num_tiles - 1
        pl.when(is_last)(masked_loss)
        pl.when(jnp.logical_not(is_last))(full_loss)


def prepare_byol_params(w_enc, b_enc, w_proj, b_proj, w_pred, b_pred, lane=128):
    """Cast weights to bf16 and zero-pad feature dims to the 128-lane width.

    Zero padding columns/rows is numerically transparent for the L2 norms and the
    sum-of-squares loss (padded activations are exactly zero).
    """
    d_in, emb = w_enc.shape
    proj = w_proj.shape[1]
    e_pad = _round_up(emb, lane)
    p_pad = _round_up(proj, lane)
    wd = jnp.bfloat16

    w_enc_p = jnp.zeros((d_in, e_pad), wd).at[:, :emb].set(w_enc.astype(wd))
    b_enc_p = jnp.zeros((1, e_pad), jnp.float32).at[:, :emb].set(b_enc.reshape(1, -1))
    w_proj_p = jnp.zeros((e_pad, p_pad), wd).at[:emb, :proj].set(w_proj.astype(wd))
    b_proj_p = jnp.zeros((1, p_pad), jnp.float32).at[:, :proj].set(b_proj.reshape(1, -1))
    w_pred_p = jnp.zeros((p_pad, p_pad), wd).at[:proj, :proj].set(w_pred.astype(wd))
    b_pred_p = jnp.zeros((1, p_pad), jnp.float32).at[:, :proj].set(b_pred.reshape(1, -1))
    return dict(w_enc=w_enc_p, b_enc=b_enc_p,
                w_proj=w_proj_p, b_proj=b_proj_p,
                w_pred=w_pred_p, b_pred=b_pred_p)


def byol_forward(v_flat, vp_flat, params, *, tile_m=512):
    """Scalar BYOL loss via a batch-tiled Pallas call (weights stay VMEM-resident)."""
    B, d_in = v_flat.shape

    # bf16-aligned (multiple-of-16) row tiles; cap at ceil(B/2) rounded up so that
    # realistic batch sizes give >= 2 tiles (both v7x TensorCores get work), while a
    # tiny B collapses to a single 16-row tile.
    tile_m = max(16, min(_round_up(tile_m, 16), _round_up(pl.cdiv(B, 2), 16)))
    b_pad = _round_up(B, tile_m)
    num_tiles = b_pad // tile_m

    v_p = jnp.pad(v_flat, ((0, b_pad - B), (0, 0))).astype(jnp.bfloat16)
    vp_p = jnp.pad(vp_flat, ((0, b_pad - B), (0, 0))).astype(jnp.bfloat16)

    e_pad = params['w_enc'].shape[1]
    p_pad = params['w_proj'].shape[1]

    kernel = functools.partial(byol_forward_kernel,
                               batch=B, tile_m=tile_m, num_tiles=num_tiles)

    # Grid-invariant weight/bias blocks: single-buffer them once they are big enough
    # to matter for VMEM (v7x has only 64 MiB per TensorCore). Tiny stand-in weights
    # keep the default pipelining.
    weight_bytes = 2 * (d_in * e_pad + e_pad * p_pad + p_pad * p_pad)
    wmode = {'pipeline_mode': pl.Buffered(1)} if weight_bytes > (4 << 20) else {}

    # TODO(synk): for a realistic flattened-image d_in (>> 8K), add a K (d_in) grid
    # axis marked "arbitrary" with an f32 accumulator scratch so that neither the
    # (tile_m, d_in) input block nor the full (d_in, e_pad) encoder weight has to be
    # VMEM-resident in a single step.

    grid_spec = pltpu.PrefetchScalarGridSpec(
        num_scalar_prefetch=0,
        grid=(num_tiles,),
        in_specs=[
            pl.BlockSpec((tile_m, d_in), lambda i: (i, 0)),             # v tile
            pl.BlockSpec((tile_m, d_in), lambda i: (i, 0)),             # v' tile
            pl.BlockSpec((d_in, e_pad), lambda i: (0, 0), **wmode),     # encoder W
            pl.BlockSpec((1, e_pad), lambda i: (0, 0), **wmode),        # encoder b
            pl.BlockSpec((e_pad, p_pad), lambda i: (0, 0), **wmode),    # projector W
            pl.BlockSpec((1, p_pad), lambda i: (0, 0), **wmode),        # projector b
            pl.BlockSpec((p_pad, p_pad), lambda i: (0, 0), **wmode),    # predictor W
            pl.BlockSpec((1, p_pad), lambda i: (0, 0), **wmode),        # predictor b
        ],
        out_specs=pl.BlockSpec((1, 1), lambda i: (i, 0),
                               memory_space=pltpu.MemorySpace.SMEM),
    )

    partial_losses = pl.pallas_call(
        kernel,
        out_shape=jax.ShapeDtypeStruct((num_tiles, 1), jnp.float32),
        grid_spec=grid_spec,
        compiler_params=pltpu.CompilerParams(
            dimension_semantics=("parallel",)),
    )(v_p, vp_p,
      params['w_enc'], params['b_enc'],
      params['w_proj'], params['b_proj'],
      params['w_pred'], params['b_pred'])

    return jnp.sum(partial_losses)


def linear_init(key, din, dout):
    """PyTorch nn.Linear default init: U(-1/sqrt(fan_in), 1/sqrt(fan_in))."""
    kw, kb = jax.random.split(key)
    bound = 1.0 / (din ** 0.5)
    w = jax.random.uniform(kw, (din, dout), jnp.float32, -bound, bound)  # stored [in, out]
    b = jax.random.uniform(kb, (1, dout), jnp.float32, -bound, bound)
    return w, b


if __name__ == "__main__":
    key = jax.random.PRNGKey(0)
    B, C, H, W = 2, 4, 16, 16
    d_in = C * H * W            # flattened image features fed to the synthetic encoder
    embedding = 64              # `embedding` arg of BYOL.__init__
    projection_size = 32        # `projection_size` arg of BYOL.__init__

    k_enc, k_proj, k_pred, k_x = jax.random.split(key, 4)

    # TODO(synk): the encoder `model` passed to BYOL.__init__ is external; a
    # Linear(d_in, embedding) on the flattened image stands in for it here.
    w_enc, b_enc = linear_init(k_enc, d_in, embedding)
    w_proj, b_proj = linear_init(k_proj, embedding, projection_size)        # projector_online
    w_pred, b_pred = linear_init(k_pred, projection_size, projection_size)  # predictor_online

    # target = deepcopy(online_common): identical weights at construction time, so the
    # target branch reuses the online encoder/projector operands (deduplicated DMA).
    # TODO(synk): once EMA (update_target) diverges the target, pass the target
    # encoder/projector weights as separate operands and run v' through them.
    params = prepare_byol_params(w_enc, b_enc, w_proj, b_proj, w_pred, b_pred)

    x = jax.random.normal(k_x, (B, C, H, W), jnp.float32)

    # TODO(synk): augmentation / augmentation_prime are external callables; identity and
    # a horizontal flip (lax.rev, avoiding a negative-stride copy) stand in.
    v = x
    v_prime = jax.lax.rev(x, dimensions=(3,))

    v_flat = v.reshape(B, -1)
    vp_flat = v_prime.reshape(B, -1)

    loss = byol_forward(v_flat, vp_flat, params)
    jax.block_until_ready(loss)
    print("KERNEL_OK")
</pallas_src>

<mosaic_0001>
module attributes {stable_mosaic.version = 11 : i64} {
  func.func @byol_forward_kernel(%arg0: i32, %arg1: memref<16x1024xbf16, #tpu.memory_space<vmem>>, %arg2: memref<16x1024xbf16, #tpu.memory_space<vmem>>, %arg3: memref<1024x128xbf16, #tpu.memory_space<vmem>>, %arg4: memref<1x128xf32, #tpu.memory_space<vmem>>, %arg5: memref<128x128xbf16, #tpu.memory_space<vmem>>, %arg6: memref<1x128xf32, #tpu.memory_space<vmem>>, %arg7: memref<128x128xbf16, #tpu.memory_space<vmem>>, %arg8: memref<1x128xf32, #tpu.memory_space<vmem>>, %arg9: memref<1x1xf32, #tpu.memory_space<smem>>) attributes {dimension_semantics = [#tpu.dimension_semantics<parallel>], iteration_bounds = array<i64: 1>, scalar_prefetch = 0 : i64, scratch_operands = 0 : i64, tpu.core_type = #tpu.core_type<tc>, window_params = [{transform_indices = @transform_0, window_bounds = array<i64: 16, 1024>}, {transform_indices = @transform_1, window_bounds = array<i64: 16, 1024>}, {pipeline_mode = #tpu.pipeline_mode<synchronous>, transform_indices = @transform_2, window_bounds = array<i64: 1024, 128>}, {pipeline_mode = #tpu.pipeline_mode<synchronous>, transform_indices = @transform_3, window_bounds = array<i64: 1, 128>}, {pipeline_mode = #tpu.pipeline_mode<synchronous>, transform_indices = @transform_4, window_bounds = array<i64: 128, 128>}, {pipeline_mode = #tpu.pipeline_mode<synchronous>, transform_indices = @transform_5, window_bounds = array<i64: 1, 128>}, {pipeline_mode = #tpu.pipeline_mode<synchronous>, transform_indices = @transform_6, window_bounds = array<i64: 128, 128>}, {pipeline_mode = #tpu.pipeline_mode<synchronous>, transform_indices = @transform_7, window_bounds = array<i64: 1, 128>}, {transform_indices = @transform_8, window_bounds = array<i64: 1, 1>}]} {
    %c0 = arith.constant 0 : index
    %c0_0 = arith.constant 0 : index
    %0 = vector.load %arg1[%c0, %c0_0] : memref<16x1024xbf16, #tpu.memory_space<vmem>>, vector<16x1024xbf16>
    %c0_1 = arith.constant 0 : index
    %c0_2 = arith.constant 0 : index
    %1 = vector.load %arg3[%c0_1, %c0_2] : memref<1024x128xbf16, #tpu.memory_space<vmem>>, vector<1024x128xbf16>
    %cst = arith.constant dense<0.000000e+00> : vector<16x128xf32>
    %2 = tpu.matmul %0, %1, %cst {dimension_numbers = #tpu.dot_dimension_numbers<[1], [0], [0], [1], [0, 0, 1, 1], [], []>} : vector<16x1024xbf16>, vector<1024x128xbf16>, vector<16x128xf32> -> vector<16x128xf32>
    %c0_3 = arith.constant 0 : index
    %c0_4 = arith.constant 0 : index
    %3 = vector.load %arg4[%c0_3, %c0_4] : memref<1x128xf32, #tpu.memory_space<vmem>>, vector<1x128xf32>
    %4 = vector.broadcast %3 : vector<1x128xf32> to vector<16x128xf32>
    %5 = arith.addf %2, %4 : vector<16x128xf32>
    %6 = arith.truncf %5 : vector<16x128xf32> to vector<16x128xbf16>
    %c0_5 = arith.constant 0 : index
    %c0_6 = arith.constant 0 : index
    %7 = vector.load %arg5[%c0_5, %c0_6] : memref<128x128xbf16, #tpu.memory_space<vmem>>, vector<128x128xbf16>
    %cst_7 = arith.constant dense<0.000000e+00> : vector<16x128xf32>
    %8 = tpu.matmul %6, %7, %cst_7 {dimension_numbers = #tpu.dot_dimension_numbers<[1], [0], [0], [1], [0, 0, 1, 1], [], []>} : vector<16x128xbf16>, vector<128x128xbf16>, vector<16x128xf32> -> vector<16x128xf32>
    %c0_8 = arith.constant 0 : index
    %c0_9 = arith.constant 0 : index
    %9 = vector.load %arg6[%c0_8, %c0_9] : memref<1x128xf32, #tpu.memory_space<vmem>>, vector<1x128xf32>
    %10 = vector.broadcast %9 : vector<1x128xf32> to vector<16x128xf32>
    %11 = arith.addf %8, %10 : vector<16x128xf32>
    %12 = arith.truncf %11 : vector<16x128xf32> to vector<16x128xbf16>
    %c0_10 = arith.constant 0 : index
    %c0_11 = arith.constant 0 : index
    %13 = vector.load %arg7[%c0_10, %c0_11] : memref<128x128xbf16, #tpu.memory_space<vmem>>, vector<128x128xbf16>
    %cst_12 = arith.constant dense<0.000000e+00> : vector<16x128xf32>
    %14 = tpu.matmul %12, %13, %cst_12 {dimension_numbers = #tpu.dot_dimension_numbers<[1], [0], [0], [1], [0, 0, 1, 1], [], []>} : vector<16x128xbf16>, vector<128x128xbf16>, vector<16x128xf32> -> vector<16x128xf32>
    %c0_13 = arith.constant 0 : index
    %c0_14 = arith.constant 0 : index
    %15 = vector.load %arg8[%c0_13, %c0_14] : memref<1x128xf32, #tpu.memory_space<vmem>>, vector<1x128xf32>
    %16 = vector.broadcast %15 : vector<1x128xf32> to vector<16x128xf32>
    %17 = arith.addf %14, %16 : vector<16x128xf32>
    %c0_15 = arith.constant 0 : index
    %c0_16 = arith.constant 0 : index
    %18 = vector.load %arg2[%c0_15, %c0_16] : memref<16x1024xbf16, #tpu.memory_space<vmem>>, vector<16x1024xbf16>
    %c0_17 = arith.constant 0 : index
    %c0_18 = arith.constant 0 : index
    %19 = vector.load %arg3[%c0_17, %c0_18] : memref<1024x128xbf16, #tpu.memory_space<vmem>>, vector<1024x128xbf16>
    %cst_19 = arith.constant dense<0.000000e+00> : vector<16x128xf32>
    %20 = tpu.matmul %18, %19, %cst_19 {dimension_numbers = #tpu.dot_dimension_numbers<[1], [0], [0], [1], [0, 0, 1, 1], [], []>} : vector<16x1024xbf16>, vector<1024x128xbf16>, vector<16x128xf32> -> vector<16x128xf32>
    %c0_20 = arith.constant 0 : index
    %c0_21 = arith.constant 0 : index
    %21 = vector.load %arg4[%c0_20, %c0_21] : memref<1x128xf32, #tpu.memory_space<vmem>>, vector<1x128xf32>
    %22 = vector.broadcast %21 : vector<1x128xf32> to vector<16x128xf32>
    %23 = arith.addf %20, %22 : vector<16x128xf32>
    %24 = arith.truncf %23 : vector<16x128xf32> to vector<16x128xbf16>
    %c0_22 = arith.constant 0 : index
    %c0_23 = arith.constant 0 : index
    %25 = vector.load %arg5[%c0_22, %c0_23] : memref<128x128xbf16, #tpu.memory_space<vmem>>, vector<128x128xbf16>
    %cst_24 = arith.constant dense<0.000000e+00> : vector<16x128xf32>
    %26 = tpu.matmul %24, %25, %cst_24 {dimension_numbers = #tpu.dot_dimension_numbers<[1], [0], [0], [1], [0, 0, 1, 1], [], []>} : vector<16x128xbf16>, vector<128x128xbf16>, vector<16x128xf32> -> vector<16x128xf32>
    %c0_25 = arith.constant 0 : index
    %c0_26 = arith.constant 0 : index
    %27 = vector.load %arg6[%c0_25, %c0_26] : memref<1x128xf32, #tpu.memory_space<vmem>>, vector<1x128xf32>
    %28 = vector.broadcast %27 : vector<1x128xf32> to vector<16x128xf32>
    %29 = arith.addf %26, %28 : vector<16x128xf32>
    %30 = arith.mulf %17, %17 : vector<16x128xf32>
    %cst_27 = arith.constant dense<0.000000e+00> : vector<16xf32>
    %31 = vector.multi_reduction <add>, %30, %cst_27 [1] : vector<16x128xf32> to vector<16xf32>
    %32 = vector.shape_cast %31 : vector<16xf32> to vector<16x1xf32>
    %cst_28 = arith.constant 1.000000e-24 : f32
    %33 = vector.broadcast %cst_28 : f32 to vector<16x1xf32>
    %34 = arith.maximumf %32, %33 : vector<16x1xf32>
    %35 = math.rsqrt %34 : vector<16x1xf32>
    %36 = vector.broadcast %35 : vector<16x1xf32> to vector<16x128xf32>
    %37 = arith.mulf %17, %36 : vector<16x128xf32>
    %38 = arith.mulf %29, %29 : vector<16x128xf32>
    %cst_29 = arith.constant dense<0.000000e+00> : vector<16xf32>
    %39 = vector.multi_reduction <add>, %38, %cst_29 [1] : vector<16x128xf32> to vector<16xf32>
    %40 = vector.shape_cast %39 : vector<16xf32> to vector<16x1xf32>
    %cst_30 = arith.constant 1.000000e-24 : f32
    %41 = vector.broadcast %cst_30 : f32 to vector<16x1xf32>
    %42 = arith.maximumf %40, %41 : vector<16x1xf32>
    %43 = math.rsqrt %42 : vector<16x1xf32>
    %44 = vector.broadcast %43 : vector<16x1xf32> to vector<16x128xf32>
    %45 = arith.mulf %29, %44 : vector<16x128xf32>
    %46 = arith.subf %37, %45 : vector<16x128xf32>
    %47 = tpu.iota {dimensions = array<i32: 0>} : vector<16x128xi32>
    %c2_i32 = arith.constant 2 : i32
    %48 = vector.broadcast %c2_i32 : i32 to vector<16x128xi32>
    %49 = arith.cmpi slt, %47, %48 : vector<16x128xi32>
    %cst_31 = arith.constant 0.000000e+00 : f32
    %50 = vector.broadcast %cst_31 : f32 to vector<16x128xf32>
    %51 = arith.select %49, %46, %50 : vector<16x128xi1>, vector<16x128xf32>
    %52 = arith.mulf %51, %51 : vector<16x128xf32>
    %53 = vector.shape_cast %52 : vector<16x128xf32> to vector<1x16x128xf32>
    %cst_32 = arith.constant dense<0.000000e+00> : vector<1xf32>
    %54 = vector.multi_reduction <add>, %53, %cst_32 [1, 2] : vector<1x16x128xf32> to vector<1xf32>
    %55 = vector.shape_cast %54 : vector<1xf32> to vector<1x1x1xf32>
    %56 = vector.extract %55[0, 0, 0] : f32 from vector<1x1x1xf32>
    %c0_33 = arith.constant 0 : index
    %c0_34 = arith.constant 0 : index
    %57 = memref.load %arg9[%c0_33, %c0_34] : memref<1x1xf32, #tpu.memory_space<smem>>
    memref.store %56, %arg9[%c0_33, %c0_34] : memref<1x1xf32, #tpu.memory_space<smem>>
    return
  }
  func.func @transform_0(%arg0: i32) -> (i32, i32) {
    %c0_i32 = arith.constant 0 : i32
    %c0_i32_0 = arith.constant 0 : i32
    return %arg0, %c0_i32 : i32, i32
  }
  func.func @transform_1(%arg0: i32) -> (i32, i32) {
    %c0_i32 = arith.constant 0 : i32
    %c0_i32_0 = arith.constant 0 : i32
    return %arg0, %c0_i32 : i32, i32
  }
  func.func @transform_2(%arg0: i32) -> (i32, i32) {
    %c0_i32 = arith.constant 0 : i32
    %c0_i32_0 = arith.constant 0 : i32
    %c0_i32_1 = arith.constant 0 : i32
    return %c0_i32, %c0_i32_0 : i32, i32
  }
  func.func @transform_3(%arg0: i32) -> (i32, i32) {
    %c0_i32 = arith.constant 0 : i32
    %c0_i32_0 = arith.constant 0 : i32
    %c0_i32_1 = arith.constant 0 : i32
    return %c0_i32, %c0_i32_0 : i32, i32
  }
  func.func @transform_4(%arg0: i32) -> (i32, i32) {
    %c0_i32 = arith.constant 0 : i32
    %c0_i32_0 = arith.constant 0 : i32
    %c0_i32_1 = arith.constant 0 : i32
    return %c0_i32, %c0_i32_0 : i32, i32
  }
  func.func @transform_5(%arg0: i32) -> (i32, i32) {
    %c0_i32 = arith.constant 0 : i32
    %c0_i32_0 = arith.constant 0 : i32
    %c0_i32_1 = arith.constant 0 : i32
    return %c0_i32, %c0_i32_0 : i32, i32
  }
  func.func @transform_6(%arg0: i32) -> (i32, i32) {
    %c0_i32 = arith.constant 0 : i32
    %c0_i32_0 = arith.constant 0 : i32
    %c0_i32_1 = arith.constant 0 : i32
    return %c0_i32, %c0_i32_0 : i32, i32
  }
  func.func @transform_7(%arg0: i32) -> (i32, i32) {
    %c0_i32 = arith.constant 0 : i32
    %c0_i32_0 = arith.constant 0 : i32
    %c0_i32_1 = arith.constant 0 : i32
    return %c0_i32, %c0_i32_0 : i32, i32
  }
  func.func @transform_8(%arg0: i32) -> (i32, i32) {
    %c0_i32 = arith.constant 0 : i32
    %c0_i32_0 = arith.constant 0 : i32
    return %arg0, %c0_i32 : i32, i32
  }
}

</mosaic_0001>

<llo_original>
// kernel: tpu_custom_call.1
$region0: #{tpu_custom_call.1}
  #allocation0 [shape = 'u32[]', space=smem, size = 0x4, offset = 0x4, fixed_abs, tag = 'smem constant byte address 0x4 - core index']
  #allocation1 [shape = 'u32[144,128]{1,0:T(1,128)}', space=vmem, size = 0x12000, scoped, tag = 'internal scratch']
  %s0 = inlined_call_operand.hbm [shape: bf16[16,1024], index: 0, kind: input, shape index: {}]
  %s1 = inlined_call_operand.hbm [shape: bf16[16,1024], index: 1, kind: input, shape index: {}]
  %s2 = inlined_call_operand.hbm [shape: bf16[1024,128], index: 2, kind: input, shape index: {}]
  %s3 = inlined_call_operand.vmem [shape: f32[1,128], index: 3, kind: input, shape index: {}]
  %s4 = inlined_call_operand.hbm [shape: bf16[128,128], index: 4, kind: input, shape index: {}]
  %s5 = inlined_call_operand.vmem [shape: f32[1,128], index: 5, kind: input, shape index: {}]
  %s6 = inlined_call_operand.hbm [shape: bf16[128,128], index: 6, kind: input, shape index: {}]
  %s7 = inlined_call_operand.vmem [shape: f32[1,128], index: 7, kind: input, shape index: {}]
  %s8 = inlined_call_operand.hbm [shape: f32[1,1], index: 8, kind: output, shape index: {}]
  %s9 = sld [smem:[#allocation0]]
  $region62: #{tpu_custom_call.1} parent=0
    _
  %s11 = ssub.s32 1, %s9
  %s12 = scalar_select 0, %s11, %s9
  $region1: #{tpu_custom_call.1} parent=0
    #allocation2 [shape = 'u8[32768]{0}', space=vmem, size = 0x8000, scoped, tag = 'input window, operand 0, single buffered']
    #allocation3 [shape = 's32[1]{0}', space=sflag, size = 0x4, scoped, tag = 'scoped memory for tpu_custom_call.1']
    #allocation4 [shape = 's32[1]{0}', space=sflag, size = 0x4, scoped, tag = 'scoped memory for tpu_custom_call.1']
    #allocation5 [shape = 'u8[32768]{0}', space=vmem, size = 0x8000, scoped, tag = 'input window, operand 1, single buffered']
    #allocation6 [shape = 's32[1]{0}', space=sflag, size = 0x4, scoped, tag = 'scoped memory for tpu_custom_call.1']
    #allocation7 [shape = 'u8[262144]{0}', space=vmem, size = 0x40000, scoped, tag = 'input window, operand 2, single buffered']
    #allocation8 [shape = 'u8[32768]{0}', space=vmem, size = 0x8000, scoped, tag = 'input window, operand 4, single buffered']
    #allocation9 [shape = 's32[1]{0}', space=sflag, size = 0x4, scoped, tag = 'scoped memory for tpu_custom_call.1']
    #allocation10 [shape = 'u8[32768]{0}', space=vmem, size = 0x8000, scoped, tag = 'input window, operand 6, single buffered']
    #allocation11 [shape = 'u8[512]{0}', space=smem, size = 0x200, scoped, tag = 'output window, operand 0, single buffered']
    %13 = vsyncpa [#allocation3], 0
    %14 = vsyncpa [#allocation6], 0
    %15 = vsyncpa [#allocation9], 0
    %16 = vsyncpa [#allocation4], 0
    // Predicated region
    $region2: #{tpu_custom_call.1} parent=1 // pred_check
      _
    $region3: #{tpu_custom_call.1} parent=1 // pred_check_branch
      %18 = sbr.rel (0) target = $region5
    $region4: #{tpu_custom_call.1} parent=1 // pred_region
      %s20 = ssub.s32 1024, 1024
      %21 = vsyncadd [#allocation3], %s20
      %s22 = sshll.u32 [#allocation2], 4
      %s23 = int_to_ptr.vmem [resolvable:$true] %s22
      %28 = dma.hbm_to_vmem [thread:$0]  %s0, 1024, %s23, [#allocation3], 512, 512, 32
    $region5: #{tpu_custom_call.1} parent=1 // pred_fallthru
      _
    // Predicated region
    $region6: #{tpu_custom_call.1} parent=1 // pred_check
      _
    $region7: #{tpu_custom_call.1} parent=1 // pred_check_branch
      %30 = sbr.rel (0) target = $region9
    $region8: #{tpu_custom_call.1} parent=1 // pred_region
      %s32 = ssub.s32 1024, 1024
      %33 = vsyncadd [#allocation6], %s32
      %s34 = sshll.u32 [#allocation5], 4
      %s35 = int_to_ptr.vmem [resolvable:$true] %s34
      %40 = dma.hbm_to_vmem [thread:$0]  %s1, 1024, %s35, [#allocation6], 512, 512, 32
    $region9: #{tpu_custom_call.1} parent=1 // pred_fallthru
      _
    // Predicated region
    $region10: #{tpu_custom_call.1} parent=1 // pred_check
      _
    $region11: #{tpu_custom_call.1} parent=1 // pred_check_branch
      %42 = sbr.rel (0) target = $region13
    $region12: #{tpu_custom_call.1} parent=1 // pred_region
      %s44 = ssub.s32 8192, 8192
      %45 = vsyncadd [#allocation6], %s44
      %s46 = sshll.u32 [#allocation7], 4
      %s47 = int_to_ptr.vmem [resolvable:$true] %s46
      %52 = dma.hbm_to_vmem [thread:$0]  %s2, 8192, %s47, [#allocation6], 64, 64, 4
    $region13: #{tpu_custom_call.1} parent=1 // pred_fallthru
      _
    // Predicated region
    $region14: #{tpu_custom_call.1} parent=1 // pred_check
      _
    $region15: #{tpu_custom_call.1} parent=1 // pred_check_branch
      %54 = sbr.rel (0) target = $region17
    $region16: #{tpu_custom_call.1} parent=1 // pred_region
      _
    $region17: #{tpu_custom_call.1} parent=1 // pred_fallthru
      _
    // Predicated region
    $region18: #{tpu_custom_call.1} parent=1 // pred_check
      _
    $region19: #{tpu_custom_call.1} parent=1 // pred_check_branch
      %56 = sbr.rel (0) target = $region21
    $region20: #{tpu_custom_call.1} parent=1 // pred_region
      %s58 = ssub.s32 1024, 1024
      %59 = vsyncadd [#allocation9], %s58
      %s60 = sshll.u32 [#allocation8], 4
      %s61 = int_to_ptr.vmem [resolvable:$true] %s60
      %66 = dma.hbm_to_vmem [thread:$0]  %s4, 1024, %s61, [#allocation9], 64, 64, 4
    $region21: #{tpu_custom_call.1} parent=1 // pred_fallthru
      _
    // Predicated region
    $region22: #{tpu_custom_call.1} parent=1 // pred_check
      _
    $region23: #{tpu_custom_call.1} parent=1 // pred_check_branch
      %68 = sbr.rel (0) target = $region25
    $region24: #{tpu_custom_call.1} parent=1 // pred_region
      _
    $region25: #{tpu_custom_call.1} parent=1 // pred_fallthru
      _
    // Predicated region
    $region26: #{tpu_custom_call.1} parent=1 // pred_check
      _
    $region27: #{tpu_custom_call.1} parent=1 // pred_check_branch
      %70 = sbr.rel (0) target = $region29
    $region28: #{tpu_custom_call.1} parent=1 // pred_region
      %s72 = ssub.s32 1024, 1024
      %73 = vsyncadd [#allocation9], %s72
      %s74 = sshll.u32 [#allocation10], 4
      %s75 = int_to_ptr.vmem [resolvable:$true] %s74
      %80 = dma.hbm_to_vmem [thread:$0]  %s6, 1024, %s75, [#allocation9], 64, 64, 4
    $region29: #{tpu_custom_call.1} parent=1 // pred_fallthru
      _
    // Predicated region
    $region30: #{tpu_custom_call.1} parent=1 // pred_check
      _
    $region31: #{tpu_custom_call.1} parent=1 // pred_check_branch
      %82 = sbr.rel (0) target = $region33
    $region32: #{tpu_custom_call.1} parent=1 // pred_region
      _
    $region33: #{tpu_custom_call.1} parent=1 // pred_fallthru
      _
    // Predicated region
    $region34: #{tpu_custom_call.1} parent=1 // pred_check
      _
    $region35: #{tpu_custom_call.1} parent=1 // pred_check_branch
      %84 = sbr.rel (0) target = $region37
    $region36: #{tpu_custom_call.1} parent=1 // pred_region
      %85 = dma.done [#allocation3], 1024
    $region37: #{tpu_custom_call.1} parent=1 // pred_fallthru
      _
    // Predicated region
    $region38: #{tpu_custom_call.1} parent=1 // pred_check
      _
    $region39: #{tpu_custom_call.1} parent=1 // pred_check_branch
      %87 = sbr.rel (0) target = $region41
    $region40: #{tpu_custom_call.1} parent=1 // pred_region
      %88 = dma.done [#allocation6], 1024
    $region41: #{tpu_custom_call.1} parent=1 // pred_fallthru
      _
    // Predicated region
    $region42: #{tpu_custom_call.1} parent=1 // pred_check
      _
    $region43: #{tpu_custom_call.1} parent=1 // pred_check_branch
      %90 = sbr.rel (0) target = $region45
    $region44: #{tpu_custom_call.1} parent=1 // pred_region
      %91 = dma.done [#allocation6], 8192
    $region45: #{tpu_custom_call.1} parent=1 // pred_fallthru
      _
    // Predicated region
    $region46: #{tpu_custom_call.1} parent=1 // pred_check
      _
    $region47: #{tpu_custom_call.1} parent=1 // pred_check_branch
      %93 = sbr.rel (0) target = $region49
    $region48: #{tpu_custom_call.1} parent=1 // pred_region
      %94 = dma.done [#allocation9], 1024
    $region49: #{tpu_custom_call.1} parent=1 // pred_fallthru
      _
    // Predicated region
    $region50: #{tpu_custom_call.1} parent=1 // pred_check
      _
    $region51: #{tpu_custom_call.1} parent=1 // pred_check_branch
      %96 = sbr.rel (0) target = $region53
    $region52: #{tpu_custom_call.1} parent=1 // pred_region
      %97 = dma.done [#allocation9], 1024
    $region53: #{tpu_custom_call.1} parent=1 // pred_fallthru
      _
    %v99 = vld [vmem:[#allocation2] sm:$0xff]
    %v100 = vld [vmem:[#allocation2 + $0x8] sm:$0xff]
    %v101 = vld [vmem:[#allocation2 + $0x10] sm:$0xff]
    %v102 = vld [vmem:[#allocation2 + $0x18] sm:$0xff]
    %v103 = vld [vmem:[#allocation2 + $0x20] sm:$0xff]
    %v104 = vld [vmem:[#allocation2 + $0x28] sm:$0xff]
    %v105 = vld [vmem:[#allocation2 + $0x30] sm:$0xff]
    %v106 = vld [vmem:[#allocation2 + $0x38] sm:$0xff]
    %v107 = vld [vmem:[#allocation7] sm:$0xf]
    %v108 = vld [vmem:[#allocation7 + $0x4] sm:$0xf]
    %v109 = vld [vmem:[#allocation7 + $0x8] sm:$0xf]
    %v110 = vld [vmem:[#allocation7 + $0xc] sm:$0xf]
    %v111 = vld [vmem:[#allocation7 + $0x10] sm:$0xf]
    %v112 = vld [vmem:[#allocation7 + $0x14] sm:$0xf]
    %v113 = vld [vmem:[#allocation7 + $0x18] sm:$0xf]
    %v114 = vld [vmem:[#allocation7 + $0x1c] sm:$0xf]
    %v115 = vld [vmem:[#allocation7 + $0x20] sm:$0xf]
    %v116 = vld [vmem:[#allocation7 + $0x24] sm:$0xf]
    %v117 = vld [vmem:[#allocation7 + $0x28] sm:$0xf]
    %v118 = vld [vmem:[#allocation7 + $0x2c] sm:$0xf]
    %v119 = vld [vmem:[#allocation7 + $0x30] sm:$0xf]
    %v120 = vld [vmem:[#allocation7 + $0x34] sm:$0xf]
    %v121 = vld [vmem:[#allocation7 + $0x38] sm:$0xf]
    %v122 = vld [vmem:[#allocation7 + $0x3c] sm:$0xf]
    %v123 = vld [vmem:[#allocation7 + $0x40] sm:$0xf]
    %v124 = vld [vmem:[#allocation7 + $0x44] sm:$0xf]
    %v125 = vld [vmem:[#allocation7 + $0x48] sm:$0xf]
    %v126 = vld [vmem:[#allocation7 + $0x4c] sm:$0xf]
    %v127 = vld [vmem:[#allocation7 + $0x50] sm:$0xf]
    %v128 = vld [vmem:[#allocation7 + $0x54] sm:$0xf]
    %v129 = vld [vmem:[#allocation7 + $0x58] sm:$0xf]
    %v130 = vld [vmem:[#allocation7 + $0x5c] sm:$0xf]
    %v131 = vld [vmem:[#allocation7 + $0x60] sm:$0xf]
    %v132 = vld [vmem:[#allocation7 + $0x64] sm:$0xf]
    %v133 = vld [vmem:[#allocation7 + $0x68] sm:$0xf]
    %v134 = vld [vmem:[#allocation7 + $0x6c] sm:$0xf]
    %v135 = vld [vmem:[#allocation7 + $0x70] sm:$0xf]
    %v136 = vld [vmem:[#allocation7 + $0x74] sm:$0xf]
    %v137 = vld [vmem:[#allocation7 + $0x78] sm:$0xf]
    %v138 = vld [vmem:[#allocation7 + $0x7c] sm:$0xf]
    %v139 = vld [vmem:[#allocation7 + $0x80] sm:$0xf]
    %v140 = vld [vmem:[#allocation7 + $0x84] sm:$0xf]
    %v141 = vld [vmem:[#allocation7 + $0x88] sm:$0xf]
    %v142 = vld [vmem:[#allocation7 + $0x8c] sm:$0xf]
    %v143 = vld [vmem:[#allocation7 + $0x90] sm:$0xf]
    %v144 = vld [vmem:[#allocation7 + $0x94] sm:$0xf]
    %v145 = vld [vmem:[#allocation7 + $0x98] sm:$0xf]
    %v146 = vld [vmem:[#allocation7 + $0x9c] sm:$0xf]
    %v147 = vld [vmem:[#allocation7 + $0xa0] sm:$0xf]
    %v148 = vld [vmem:[#allocation7 + $0xa4] sm:$0xf]
    %v149 = vld [vmem:[#allocation7 + $0xa8] sm:$0xf]
    %v150 = vld [vmem:[#allocation7 + $0xac] sm:$0xf]
    %v151 = vld [vmem:[#allocation7 + $0xb0] sm:$0xf]
    %v152 = vld [vmem:[#allocation7 + $0xb4] sm:$0xf]
    %v153 = vld [vmem:[#allocation7 + $0xb8] sm:$0xf]
    %v154 = vld [vmem:[#allocation7 + $0xbc] sm:$0xf]
    %v155 = vld [vmem:[#allocation7 + $0xc0] sm:$0xf]
    %v156 = vld [vmem:[#allocation7 + $0xc4] sm:$0xf]
    %v157 = vld [vmem:[#allocation7 + $0xc8] sm:$0xf]
    %v158 = vld [vmem:[#allocation7 + $0xcc] sm:$0xf]
    %v159 = vld [vmem:[#allocation7 + $0xd0] sm:$0xf]
    %v160 = vld [vmem:[#allocation7 + $0xd4] sm:$0xf]
    %v161 = vld [vmem:[#allocation7 + $0xd8] sm:$0xf]
    %v162 = vld [vmem:[#allocation7 + $0xdc] sm:$0xf]
    %v163 = vld [vmem:[#allocation7 + $0xe0] sm:$0xf]
    %v164 = vld [vmem:[#allocation7 + $0xe4] sm:$0xf]
    %v165 = vld [vmem:[#allocation7 + $0xe8] sm:$0xf]
    %v166 = vld [vmem:[#allocation7 + $0xec] sm:$0xf]
    %v167 = vld [vmem:[#allocation7 + $0xf0] sm:$0xf]
    %v168 = vld [vmem:[#allocation7 + $0xf4] sm:$0xf]
    %v169 = vld [vmem:[#allocation7 + $0xf8] sm:$0xf]
    %v170 = vld [vmem:[#allocation7 + $0xfc] sm:$0xf]
    %v171 = vld [vmem:[#allocation7 + $0x100] sm:$0xf]
    %v172 = vld [vmem:[#allocation7 + $0x104] sm:$0xf]
    %v173 = vld [vmem:[#allocation7 + $0x108] sm:$0xf]
    %v174 = vld [vmem:[#allocation7 + $0x10c] sm:$0xf]
    %v175 = vld [vmem:[#allocation7 + $0x110] sm:$0xf]
    %v176 = vld [vmem:[#allocation7 + $0x114] sm:$0xf]
    %v177 = vld [vmem:[#allocation7 + $0x118] sm:$0xf]
    %v178 = vld [vmem:[#allocation7 + $0x11c] sm:$0xf]
    %v179 = vld [vmem:[#allocation7 + $0x120] sm:$0xf]
    %v180 = vld [vmem:[#allocation7 + $0x124] sm:$0xf]
    %v181 = vld [vmem:[#allocation7 + $0x128] sm:$0xf]
    %v182 = vld [vmem:[#allocation7 + $0x12c] sm:$0xf]
    %v183 = vld [vmem:[#allocation7 + $0x130] sm:$0xf]
    %v184 = vld [vmem:[#allocation7 + $0x134] sm:$0xf]
    %v185 = vld [vmem:[#allocation7 + $0x138] sm:$0xf]
    %v186 = vld [vmem:[#allocation7 + $0x13c] sm:$0xf]
    %v187 = vld [vmem:[#allocation7 + $0x140] sm:$0xf]
    %v188 = vld [vmem:[#allocation7 + $0x144] sm:$0xf]
    %v189 = vld [vmem:[#allocation7 + $0x148] sm:$0xf]
    %v190 = vld [vmem:[#allocation7 + $0x14c] sm:$0xf]
    %v191 = vld [vmem:[#allocation7 + $0x150] sm:$0xf]
    %v192 = vld [vmem:[#allocation7 + $0x154] sm:$0xf]
    %v193 = vld [vmem:[#allocation7 + $0x158] sm:$0xf]
    %v194 = vld [vmem:[#allocation7 + $0x15c] sm:$0xf]
    %v195 = vld [vmem:[#allocation7 + $0x160] sm:$0xf]
    %v196 = vld [vmem:[#allocation7 + $0x164] sm:$0xf]
    %v197 = vld [vmem:[#allocation7 + $0x168] sm:$0xf]
    %v198 = vld [vmem:[#allocation7 + $0x16c] sm:$0xf]
    %v199 = vld [vmem:[#allocation7 + $0x170] sm:$0xf]
    %v200 = vld [vmem:[#allocation7 + $0x174] sm:$0xf]
    %v201 = vld [vmem:[#allocation7 + $0x178] sm:$0xf]
    %v202 = vld [vmem:[#allocation7 + $0x17c] sm:$0xf]
    %v203 = vld [vmem:[#allocation7 + $0x180] sm:$0xf]
    %v204 = vld [vmem:[#allocation7 + $0x184] sm:$0xf]
    %v205 = vld [vmem:[#allocation7 + $0x188] sm:$0xf]
    %v206 = vld [vmem:[#allocation7 + $0x18c] sm:$0xf]
    %v207 = vld [vmem:[#allocation7 + $0x190] sm:$0xf]
    %v208 = vld [vmem:[#allocation7 + $0x194] sm:$0xf]
    %v209 = vld [vmem:[#allocation7 + $0x198] sm:$0xf]
    %v210 = vld [vmem:[#allocation7 + $0x19c] sm:$0xf]
    %v211 = vld [vmem:[#allocation7 + $0x1a0] sm:$0xf]
    %v212 = vld [vmem:[#allocation7 + $0x1a4] sm:$0xf]
    %v213 = vld [vmem:[#allocation7 + $0x1a8] sm:$0xf]
    %v214 = vld [vmem:[#allocation7 + $0x1ac] sm:$0xf]
    %v215 = vld [vmem:[#allocation7 + $0x1b0] sm:$0xf]
    %v216 = vld [vmem:[#allocation7 + $0x1b4] sm:$0xf]
    %v217 = vld [vmem:[#allocation7 + $0x1b8] sm:$0xf]
    %v218 = vld [vmem:[#allocation7 + $0x1bc] sm:$0xf]
    %v219 = vld [vmem:[#allocation7 + $0x1c0] sm:$0xf]
    %v220 = vld [vmem:[#allocation7 + $0x1c4] sm:$0xf]
    %v221 = vld [vmem:[#allocation7 + $0x1c8] sm:$0xf]
    %v222 = vld [vmem:[#allocation7 + $0x1cc] sm:$0xf]
    %v223 = vld [vmem:[#allocation7 + $0x1d0] sm:$0xf]
    %v224 = vld [vmem:[#allocation7 + $0x1d4] sm:$0xf]
    %v225 = vld [vmem:[#allocation7 + $0x1d8] sm:$0xf]
    %v226 = vld [vmem:[#allocation7 + $0x1dc] sm:$0xf]
    %v227 = vld [vmem:[#allocation7 + $0x1e0] sm:$0xf]
    %v228 = vld [vmem:[#allocation7 + $0x1e4] sm:$0xf]
    %v229 = vld [vmem:[#allocation7 + $0x1e8] sm:$0xf]
    %v230 = vld [vmem:[#allocation7 + $0x1ec] sm:$0xf]
    %v231 = vld [vmem:[#allocation7 + $0x1f0] sm:$0xf]
    %v232 = vld [vmem:[#allocation7 + $0x1f4] sm:$0xf]
    %v233 = vld [vmem:[#allocation7 + $0x1f8] sm:$0xf]
    %v234 = vld [vmem:[#allocation7 + $0x1fc] sm:$0xf]
    %v235 = vld [vmem:[%s3] sm:$0x1]
    %v237 = vlaneseq
    %v238 = vshrl.u32 %v237, 7
    %v239 = vsub.s32 0, %v238
    %v240 = vrot.slane %v235, %v239
    %v250 = vunpack.c.l.b16 %v99
    %v251 = vunpack.c.h.b16 %v99
    %v252 = vunpack.c.l.b16 %v100
    %v253 = vunpack.c.h.b16 %v100
    %v254 = vunpack.c.l.b16 %v101
    %v255 = vunpack.c.h.b16 %v101
    %v256 = vunpack.c.l.b16 %v102
    %v257 = vunpack.c.h.b16 %v102
    %v258 = vunpack.c.l.b16 %v103
    %v259 = vunpack.c.h.b16 %v103
    %v260 = vunpack.c.l.b16 %v104
    %v261 = vunpack.c.h.b16 %v104
    %v262 = vunpack.c.l.b16 %v105
    %v263 = vunpack.c.h.b16 %v105
    %v264 = vunpack.c.l.b16 %v106
    %v265 = vunpack.c.h.b16 %v106
    %v266 = vpack.c.b16 %v258, %v250
    %v267 = vpack.c.b16 %v259, %v251
    %v268 = vpack.c.b16 %v260, %v252
    %v269 = vpack.c.b16 %v261, %v253
    %v270 = vpack.c.b16 %v262, %v254
    %v271 = vpack.c.b16 %v263, %v255
    %v272 = vpack.c.b16 %v264, %v256
    %v273 = vpack.c.b16 %v265, %v257
    %v410 = vunpack.c.l.b16 %v107
    %v411 = vunpack.c.l.b16 %v108
    %v412 = vunpack.c.l.b16 %v109
    %v413 = vunpack.c.l.b16 %v110
    %v414 = vunpack.c.l.b16 %v111
    %v415 = vunpack.c.l.b16 %v112
    %v416 = vunpack.c.l.b16 %v113
    %v417 = vunpack.c.l.b16 %v114
    %v418 = vunpack.c.l.b16 %v115
    %v419 = vunpack.c.l.b16 %v116
    %v420 = vunpack.c.l.b16 %v117
    %v421 = vunpack.c.l.b16 %v118
    %v422 = vunpack.c.l.b16 %v119
    %v423 = vunpack.c.l.b16 %v120
    %v424 = vunpack.c.l.b16 %v121
    %v425 = vunpack.c.l.b16 %v122
    %v426 = vunpack.c.l.b16 %v123
    %v427 = vunpack.c.l.b16 %v124
    %v428 = vunpack.c.l.b16 %v125
    %v429 = vunpack.c.l.b16 %v126
    %v430 = vunpack.c.l.b16 %v127
    %v431 = vunpack.c.l.b16 %v128
    %v432 = vunpack.c.l.b16 %v129
    %v433 = vunpack.c.l.b16 %v130
    %v434 = vunpack.c.l.b16 %v131
    %v435 = vunpack.c.l.b16 %v132
    %v436 = vunpack.c.l.b16 %v133
    %v437 = vunpack.c.l.b16 %v134
    %v438 = vunpack.c.l.b16 %v135
    %v439 = vunpack.c.l.b16 %v136
    %v440 = vunpack.c.l.b16 %v137
    %v441 = vunpack.c.l.b16 %v138
    %v442 = vunpack.c.l.b16 %v139
    %v443 = vunpack.c.l.b16 %v140
    %v444 = vunpack.c.l.b16 %v141
    %v445 = vunpack.c.l.b16 %v142
    %v446 = vunpack.c.l.b16 %v143
    %v447 = vunpack.c.l.b16 %v144
    %v448 = vunpack.c.l.b16 %v145
    %v449 = vunpack.c.l.b16 %v146
    %v450 = vunpack.c.l.b16 %v147
    %v451 = vunpack.c.l.b16 %v148
    %v452 = vunpack.c.l.b16 %v149
    %v453 = vunpack.c.l.b16 %v150
    %v454 = vunpack.c.l.b16 %v151
    %v455 = vunpack.c.l.b16 %v152
    %v456 = vunpack.c.l.b16 %v153
    %v457 = vunpack.c.l.b16 %v154
    %v458 = vunpack.c.l.b16 %v155
    %v459 = vunpack.c.l.b16 %v156
    %v460 = vunpack.c.l.b16 %v157
    %v461 = vunpack.c.l.b16 %v158
    %v462 = vunpack.c.l.b16 %v159
    %v463 = vunpack.c.l.b16 %v160
    %v464 = vunpack.c.l.b16 %v161
    %v465 = vunpack.c.l.b16 %v162
    %v466 = vunpack.c.l.b16 %v163
    %v467 = vunpack.c.l.b16 %v164
    %v468 = vunpack.c.l.b16 %v165
    %v469 = vunpack.c.l.b16 %v166
    %v470 = vunpack.c.l.b16 %v167
    %v471 = vunpack.c.l.b16 %v168
    %v472 = vunpack.c.l.b16 %v169
    %v473 = vunpack.c.l.b16 %v170
    %v474 = vunpack.c.l.b16 %v171
    %v475 = vunpack.c.l.b16 %v172
    %v476 = vunpack.c.l.b16 %v173
    %v477 = vunpack.c.l.b16 %v174
    %v478 = vunpack.c.l.b16 %v175
    %v479 = vunpack.c.l.b16 %v176
    %v480 = vunpack.c.l.b16 %v177
    %v481 = vunpack.c.l.b16 %v178
    %v482 = vunpack.c.l.b16 %v179
    %v483 = vunpack.c.l.b16 %v180
    %v484 = vunpack.c.l.b16 %v181
    %v485 = vunpack.c.l.b16 %v182
    %v486 = vunpack.c.l.b16 %v183
    %v487 = vunpack.c.l.b16 %v184
    %v488 = vunpack.c.l.b16 %v185
    %v489 = vunpack.c.l.b16 %v186
    %v490 = vunpack.c.l.b16 %v187
    %v491 = vunpack.c.l.b16 %v188
    %v492 = vunpack.c.l.b16 %v189
    %v493 = vunpack.c.l.b16 %v190
    %v494 = vunpack.c.l.b16 %v191
    %v495 = vunpack.c.l.b16 %v192
    %v496 = vunpack.c.l.b16 %v193
    %v497 = vunpack.c.l.b16 %v194
    %v498 = vunpack.c.l.b16 %v195
    %v499 = vunpack.c.l.b16 %v196
    %v500 = vunpack.c.l.b16 %v197
    %v501 = vunpack.c.l.b16 %v198
    %v502 = vunpack.c.l.b16 %v199
    %v503 = vunpack.c.l.b16 %v200
    %v504 = vunpack.c.l.b16 %v201
    %v505 = vunpack.c.l.b16 %v202
    %v506 = vunpack.c.l.b16 %v203
    %v507 = vunpack.c.l.b16 %v204
    %v508 = vunpack.c.l.b16 %v205
    %v509 = vunpack.c.l.b16 %v206
    %v510 = vunpack.c.l.b16 %v207
    %v511 = vunpack.c.l.b16 %v208
    %v512 = vunpack.c.l.b16 %v209
    %v513 = vunpack.c.l.b16 %v210
    %v514 = vunpack.c.l.b16 %v211
    %v515 = vunpack.c.l.b16 %v212
    %v516 = vunpack.c.l.b16 %v213
    %v517 = vunpack.c.l.b16 %v214
    %v518 = vunpack.c.l.b16 %v215
    %v519 = vunpack.c.l.b16 %v216
    %v520 = vunpack.c.l.b16 %v217
    %v521 = vunpack.c.l.b16 %v218
    %v522 = vunpack.c.l.b16 %v219
    %v523 = vunpack.c.l.b16 %v220
    %v524 = vunpack.c.l.b16 %v221
    %v525 = vunpack.c.l.b16 %v222
    %v526 = vunpack.c.l.b16 %v223
    %v527 = vunpack.c.l.b16 %v224
    %v528 = vunpack.c.l.b16 %v225
    %v529 = vunpack.c.l.b16 %v226
    %v530 = vunpack.c.l.b16 %v227
    %v531 = vunpack.c.l.b16 %v228
    %v532 = vunpack.c.l.b16 %v229
    %v533 = vunpack.c.l.b16 %v230
    %v534 = vunpack.c.l.b16 %v231
    %v535 = vunpack.c.l.b16 %v232
    %v536 = vunpack.c.l.b16 %v233
    %v537 = vunpack.c.l.b16 %v234
    %v538 = vpack.c.b16 %v411, %v410
    %v539 = vpack.c.b16 %v413, %v412
    %v540 = vpack.c.b16 %v415, %v414
    %v541 = vpack.c.b16 %v417, %v416
    %v542 = vpack.c.b16 %v419, %v418
    %v543 = vpack.c.b16 %v421, %v420
    %v544 = vpack.c.b16 %v423, %v422
    %v545 = vpack.c.b16 %v425, %v424
    %v546 = vpack.c.b16 %v427, %v426
    %v547 = vpack.c.b16 %v429, %v428
    %v548 = vpack.c.b16 %v431, %v430
    %v549 = vpack.c.b16 %v433, %v432
    %v550 = vpack.c.b16 %v435, %v434
    %v551 = vpack.c.b16 %v437, %v436
    %v552 = vpack.c.b16 %v439, %v438
    %v553 = vpack.c.b16 %v441, %v440
    %v554 = vpack.c.b16 %v443, %v442
    %v555 = vpack.c.b16 %v445, %v444
    %v556 = vpack.c.b16 %v447, %v446
    %v557 = vpack.c.b16 %v449, %v448
    %v558 = vpack.c.b16 %v451, %v450
    %v559 = vpack.c.b16 %v453, %v452
    %v560 = vpack.c.b16 %v455, %v454
    %v561 = vpack.c.b16 %v457, %v456
    %v562 = vpack.c.b16 %v459, %v458
    %v563 = vpack.c.b16 %v461, %v460
    %v564 = vpack.c.b16 %v463, %v462
    %v565 = vpack.c.b16 %v465, %v464
    %v566 = vpack.c.b16 %v467, %v466
    %v567 = vpack.c.b16 %v469, %v468
    %v568 = vpack.c.b16 %v471, %v470
    %v569 = vpack.c.b16 %v473, %v472
    %v570 = vpack.c.b16 %v475, %v474
    %v571 = vpack.c.b16 %v477, %v476
    %v572 = vpack.c.b16 %v479, %v478
    %v573 = vpack.c.b16 %v481, %v480
    %v574 = vpack.c.b16 %v483, %v482
    %v575 = vpack.c.b16 %v485, %v484
    %v576 = vpack.c.b16 %v487, %v486
    %v577 = vpack.c.b16 %v489, %v488
    %v578 = vpack.c.b16 %v491, %v490
    %v579 = vpack.c.b16 %v493, %v492
    %v580 = vpack.c.b16 %v495, %v494
    %v581 = vpack.c.b16 %v497, %v496
    %v582 = vpack.c.b16 %v499, %v498
    %v583 = vpack.c.b16 %v501, %v500
    %v584 = vpack.c.b16 %v503, %v502
    %v585 = vpack.c.b16 %v505, %v504
    %v586 = vpack.c.b16 %v507, %v506
    %v587 = vpack.c.b16 %v509, %v508
    %v588 = vpack.c.b16 %v511, %v510
    %v589 = vpack.c.b16 %v513, %v512
    %v590 = vpack.c.b16 %v515, %v514
    %v591 = vpack.c.b16 %v517, %v516
    %v592 = vpack.c.b16 %v519, %v518
    %v593 = vpack.c.b16 %v521, %v520
    %v594 = vpack.c.b16 %v523, %v522
    %v595 = vpack.c.b16 %v525, %v524
    %v596 = vpack.c.b16 %v527, %v526
    %v597 = vpack.c.b16 %v529, %v528
    %v598 = vpack.c.b16 %v531, %v530
    %v599 = vpack.c.b16 %v533, %v532
    %v600 = vpack.c.b16 %v535, %v534
    %v601 = vpack.c.b16 %v537, %v536
    %666 = vmatprep.subr.bf16.mxu0 0
    %667 = vmatpush1.bf16.msra.mxu0 %v538
    %668 = vmatprep.subr.bf16.mxu0 0
    %669 = vmatpush1.bf16.msra.mxu0 %v539
    %670 = vmatprep.subr.bf16.mxu0 0
    %671 = vmatpush1.bf16.msra.mxu0 %v540
    %672 = vmatprep.subr.bf16.mxu0 0
    %673 = vmatpush1.bf16.msra.mxu0 %v541
    %674 = vmatprep.subr.bf16.mxu0 0
    %675 = vmatpush1.bf16.msra.mxu0 %v542
    %676 = vmatprep.subr.bf16.mxu0 0
    %677 = vmatpush1.bf16.msra.mxu0 %v543
    %678 = vmatprep.subr.bf16.mxu0 0
    %679 = vmatpush1.bf16.msra.mxu0 %v544
    %680 = vmatprep.subr.bf16.mxu0 0
    %681 = vmatpush1.bf16.msra.mxu0 %v545
    %682 = vmatprep.subr.bf16.mxu0 0
    %683 = vmatpush1.bf16.msra.mxu0 %v546
    %684 = vmatprep.subr.bf16.mxu0 0
    %685 = vmatpush1.bf16.msra.mxu0 %v547
    %686 = vmatprep.subr.bf16.mxu0 0
    %687 = vmatpush1.bf16.msra.mxu0 %v548
    %688 = vmatprep.subr.bf16.mxu0 0
    %689 = vmatpush1.bf16.msra.mxu0 %v549
    %690 = vmatprep.subr.bf16.mxu0 0
    %691 = vmatpush1.bf16.msra.mxu0 %v550
    %692 = vmatprep.subr.bf16.mxu0 0
    %693 = vmatpush1.bf16.msra.mxu0 %v551
    %694 = vmatprep.subr.bf16.mxu0 0
    %695 = vmatpush1.bf16.msra.mxu0 %v552
    %696 = vmatprep.subr.bf16.mxu0 0
    %697 = vmatpush1.bf16.msra.mxu0 %v553
    %698 = vmatprep.mubr.bf16.mxu0 %v267
    %699 = vmatmul.mubr.bf16.gmra.mrb[0].mxu0 %v266
    %v700 = vpop.f32.mrb[0].mxu0
    %v701 = vadd.f32 %v240, %v700
    %v702 = vpop.f32.mrb[0].mxu0
    %v703 = vpop.f32.mrb[0].mxu0
    %v704 = vadd.f32 %v240, %v703
    %v705 = vpop.f32.mrb[0].mxu0
    %706 = vdwg.mxu0
    %707 = vmatprep.subr.bf16.mxu0 0
    %708 = vmatpush1.bf16.msra.mxu0 %v554
    %709 = vmatprep.subr.bf16.mxu0 0
    %710 = vmatpush1.bf16.msra.mxu0 %v555
    %711 = vmatprep.subr.bf16.mxu0 0
    %712 = vmatpush1.bf16.msra.mxu0 %v556
    %713 = vmatprep.subr.bf16.mxu0 0
    %714 = vmatpush1.bf16.msra.mxu0 %v557
    %715 = vmatprep.subr.bf16.mxu0 0
    %716 = vmatpush1.bf16.msra.mxu0 %v558
    %717 = vmatprep.subr.bf16.mxu0 0
    %718 = vmatpush1.bf16.msra.mxu0 %v559
    %719 = vmatprep.subr.bf16.mxu0 0
    %720 = vmatpush1.bf16.msra.mxu0 %v560
    %721 = vmatprep.subr.bf16.mxu0 0
    %722 = vmatpush1.bf16.msra.mxu0 %v561
    %723 = vmatprep.subr.bf16.mxu0 0
    %724 = vmatpush1.bf16.msra.mxu0 %v562
    %725 = vmatprep.subr.bf16.mxu0 0
    %726 = vmatpush1.bf16.msra.mxu0 %v563
    %727 = vmatprep.subr.bf16.mxu0 0
    %728 = vmatpush1.bf16.msra.mxu0 %v564
    %729 = vmatprep.subr.bf16.mxu0 0
    %730 = vmatpush1.bf16.msra.mxu0 %v565
    %731 = vmatprep.subr.bf16.mxu0 0
    %732 = vmatpush1.bf16.msra.mxu0 %v566
    %733 = vmatprep.subr.bf16.mxu0 0
    %734 = vmatpush1.bf16.msra.mxu0 %v567
    %735 = vmatprep.subr.bf16.mxu0 0
    %736 = vmatpush1.bf16.msra.mxu0 %v568
    %737 = vmatprep.subr.bf16.mxu0 0
    %738 = vmatpush1.bf16.msra.mxu0 %v569
    %739 = vmatprep.mubr.bf16.mxu0 %v269
    %740 = vmatmul.mubr.bf16.gmra.mrb[0].mxu0 %v268
    %v741 = vpop.f32.mrb[0].mxu0
    %v742 = vadd.f32 %v701, %v741
    %v743 = vpop.f32.mrb[0].mxu0
    %v744 = vpop.f32.mrb[0].mxu0
    %v745 = vadd.f32 %v704, %v744
    %v746 = vpop.f32.mrb[0].mxu0
    %747 = vdwg.mxu0
    %748 = vmatprep.subr.bf16.mxu0 0
    %749 = vmatpush1.bf16.msra.mxu0 %v570
    %750 = vmatprep.subr.bf16.mxu0 0
    %751 = vmatpush1.bf16.msra.mxu0 %v571
    %752 = vmatprep.subr.bf16.mxu0 0
    %753 = vmatpush1.bf16.msra.mxu0 %v572
    %754 = vmatprep.subr.bf16.mxu0 0
    %755 = vmatpush1.bf16.msra.mxu0 %v573
    %756 = vmatprep.subr.bf16.mxu0 0
    %757 = vmatpush1.bf16.msra.mxu0 %v574
    %758 = vmatprep.subr.bf16.mxu0 0
    %759 = vmatpush1.bf16.msra.mxu0 %v575
    %760 = vmatprep.subr.bf16.mxu0 0
    %761 = vmatpush1.bf16.msra.mxu0 %v576
    %762 = vmatprep.subr.bf16.mxu0 0
    %763 = vmatpush1.bf16.msra.mxu0 %v577
    %764 = vmatprep.subr.bf16.mxu0 0
    %765 = vmatpush1.bf16.msra.mxu0 %v578
    %766 = vmatprep.subr.bf16.mxu0 0
    %767 = vmatpush1.bf16.msra.mxu0 %v579
    %768 = vmatprep.subr.bf16.mxu0 0
    %769 = vmatpush1.bf16.msra.mxu0 %v580
    %770 = vmatprep.subr.bf16.mxu0 0
    %771 = vmatpush1.bf16.msra.mxu0 %v581
    %772 = vmatprep.subr.bf16.mxu0 0
    %773 = vmatpush1.bf16.msra.mxu0 %v582
    %774 = vmatprep.subr.bf16.mxu0 0
    %775 = vmatpush1.bf16.msra.mxu0 %v583
    %776 = vmatprep.subr.bf16.mxu0 0
    %777 = vmatpush1.bf16.msra.mxu0 %v584
    %778 = vmatprep.subr.bf16.mxu0 0
    %779 = vmatpush1.bf16.msra.mxu0 %v585
    %780 = vmatprep.mubr.bf16.mxu0 %v271
    %781 = vmatmul.mubr.bf16.gmra.mrb[0].mxu0 %v270
    %v782 = vpop.f32.mrb[0].mxu0
    %v783 = vadd.f32 %v742, %v782
    %v784 = vpop.f32.mrb[0].mxu0
    %v785 = vpop.f32.mrb[0].mxu0
    %v786 = vadd.f32 %v745, %v785
    %v787 = vpop.f32.mrb[0].mxu0
    %788 = vdwg.mxu0
    %789 = vmatprep.subr.bf16.mxu0 0
    %790 = vmatpush1.bf16.msra.mxu0 %v586
    %791 = vmatprep.subr.bf16.mxu0 0
    %792 = vmatpush1.bf16.msra.mxu0 %v587
    %793 = vmatprep.subr.bf16.mxu0 0
    %794 = vmatpush1.bf16.msra.mxu0 %v588
    %795 = vmatprep.subr.bf16.mxu0 0
    %796 = vmatpush1.bf16.msra.mxu0 %v589
    %797 = vmatprep.subr.bf16.mxu0 0
    %798 = vmatpush1.bf16.msra.mxu0 %v590
    %799 = vmatprep.subr.bf16.mxu0 0
    %800 = vmatpush1.bf16.msra.mxu0 %v591
    %801 = vmatprep.subr.bf16.mxu0 0
    %802 = vmatpush1.bf16.msra.mxu0 %v592
    %803 = vmatprep.subr.bf16.mxu0 0
    %804 = vmatpush1.bf16.msra.mxu0 %v593
    %805 = vmatprep.subr.bf16.mxu0 0
    %806 = vmatpush1.bf16.msra.mxu0 %v594
    %807 = vmatprep.subr.bf16.mxu0 0
    %808 = vmatpush1.bf16.msra.mxu0 %v595
    %809 = vmatprep.subr.bf16.mxu0 0
    %810 = vmatpush1.bf16.msra.mxu0 %v596
    %811 = vmatprep.subr.bf16.mxu0 0
    %812 = vmatpush1.bf16.msra.mxu0 %v597
    %813 = vmatprep.subr.bf16.mxu0 0
    %814 = vmatpush1.bf16.msra.mxu0 %v598
    %815 = vmatprep.subr.bf16.mxu0 0
    %816 = vmatpush1.bf16.msra.mxu0 %v599
    %817 = vmatprep.subr.bf16.mxu0 0
    %818 = vmatpush1.bf16.msra.mxu0 %v600
    %819 = vmatprep.subr.bf16.mxu0 0
    %820 = vmatpush1.bf16.msra.mxu0 %v601
    %821 = vmatprep.mubr.bf16.mxu0 %v273
    %822 = vmatmul.mubr.bf16.gmra.mrb[0].mxu0 %v272
    %v823 = vpop.f32.mrb[0].mxu0
    %v824 = vadd.f32 %v783, %v823
    %v825 = vpop.f32.mrb[0].mxu0
    %v826 = vpop.f32.mrb[0].mxu0
    %v827 = vadd.f32 %v786, %v826
    %v828 = vpop.f32.mrb[0].mxu0
    %829 = vdwg.mxu0
    %v830 = vpack.c.bf16 %v827, %v824
    %v831 = vld [vmem:[#allocation8] sm:$0xf]
    %v832 = vld [vmem:[#allocation8 + $0x4] sm:$0xf]
    %v833 = vld [vmem:[#allocation8 + $0x8] sm:$0xf]
    %v834 = vld [vmem:[#allocation8 + $0xc] sm:$0xf]
    %v835 = vld [vmem:[#allocation8 + $0x10] sm:$0xf]
    %v836 = vld [vmem:[#allocation8 + $0x14] sm:$0xf]
    %v837 = vld [vmem:[#allocation8 + $0x18] sm:$0xf]
    %v838 = vld [vmem:[#allocation8 + $0x1c] sm:$0xf]
    %v839 = vld [vmem:[#allocation8 + $0x20] sm:$0xf]
    %v840 = vld [vmem:[#allocation8 + $0x24] sm:$0xf]
    %v841 = vld [vmem:[#allocation8 + $0x28] sm:$0xf]
    %v842 = vld [vmem:[#allocation8 + $0x2c] sm:$0xf]
    %v843 = vld [vmem:[#allocation8 + $0x30] sm:$0xf]
    %v844 = vld [vmem:[#allocation8 + $0x34] sm:$0xf]
    %v845 = vld [vmem:[#allocation8 + $0x38] sm:$0xf]
    %v846 = vld [vmem:[#allocation8 + $0x3c] sm:$0xf]
    %v847 = vld [vmem:[%s5] sm:$0x1]
    %v849 = vlaneseq
    %v850 = vshrl.u32 %v849, 7
    %v851 = vsub.s32 0, %v850
    %v852 = vrot.slane %v847, %v851
    %v870 = vunpack.c.l.b16 %v831
    %v871 = vunpack.c.l.b16 %v832
    %v872 = vunpack.c.l.b16 %v833
    %v873 = vunpack.c.l.b16 %v834
    %v874 = vunpack.c.l.b16 %v835
    %v875 = vunpack.c.l.b16 %v836
    %v876 = vunpack.c.l.b16 %v837
    %v877 = vunpack.c.l.b16 %v838
    %v878 = vunpack.c.l.b16 %v839
    %v879 = vunpack.c.l.b16 %v840
    %v880 = vunpack.c.l.b16 %v841
    %v881 = vunpack.c.l.b16 %v842
    %v882 = vunpack.c.l.b16 %v843
    %v883 = vunpack.c.l.b16 %v844
    %v884 = vunpack.c.l.b16 %v845
    %v885 = vunpack.c.l.b16 %v846
    %v886 = vpack.c.b16 %v871, %v870
    %v887 = vpack.c.b16 %v873, %v872
    %v888 = vpack.c.b16 %v875, %v874
    %v889 = vpack.c.b16 %v877, %v876
    %v890 = vpack.c.b16 %v879, %v878
    %v891 = vpack.c.b16 %v881, %v880
    %v892 = vpack.c.b16 %v883, %v882
    %v893 = vpack.c.b16 %v885, %v884
    %902 = vmatprep.subr.bf16.mxu0 0
    %903 = vmatpush1.bf16.msra.mxu0 %v886
    %904 = vmatprep.subr.bf16.mxu0 0
    %905 = vmatpush1.bf16.msra.mxu0 %v887
    %906 = vmatprep.subr.bf16.mxu0 0
    %907 = vmatpush1.bf16.msra.mxu0 %v888
    %908 = vmatprep.subr.bf16.mxu0 0
    %909 = vmatpush1.bf16.msra.mxu0 %v889
    %910 = vmatprep.subr.bf16.mxu0 0
    %911 = vmatpush1.bf16.msra.mxu0 %v890
    %912 = vmatprep.subr.bf16.mxu0 0
    %913 = vmatpush1.bf16.msra.mxu0 %v891
    %914 = vmatprep.subr.bf16.mxu0 0
    %915 = vmatpush1.bf16.msra.mxu0 %v892
    %916 = vmatprep.subr.bf16.mxu0 0
    %917 = vmatpush1.bf16.msra.mxu0 %v893
    %918 = vmatprep.subr.bf16.mxu0 0
    %919 = vmatpush1.bf16.msra.mxu0 0
    %920 = vmatprep.subr.bf16.mxu0 0
    %921 = vmatpush1.bf16.msra.mxu0 0
    %922 = vmatprep.subr.bf16.mxu0 0
    %923 = vmatpush1.bf16.msra.mxu0 0
    %924 = vmatprep.subr.bf16.mxu0 0
    %925 = vmatpush1.bf16.msra.mxu0 0
    %926 = vmatprep.subr.bf16.mxu0 0
    %927 = vmatpush1.bf16.msra.mxu0 0
    %928 = vmatprep.subr.bf16.mxu0 0
    %929 = vmatpush1.bf16.msra.mxu0 0
    %930 = vmatprep.subr.bf16.mxu0 0
    %931 = vmatpush1.bf16.msra.mxu0 0
    %932 = vmatprep.subr.bf16.mxu0 0
    %933 = vmatpush1.bf16.msra.mxu0 0
    %934 = vmatprep.mubr.bf16.mxu0 0
    %935 = vmatmul.mubr.bf16.gmra.mrb[0].mxu0 %v830
    %v936 = vpop.f32.mrb[0].mxu0
    %v937 = vadd.f32 %v852, %v936
    %v938 = vpop.f32.mrb[0].mxu0
    %v939 = vpop.f32.mrb[0].mxu0
    %v940 = vadd.f32 %v852, %v939
    %v941 = vpop.f32.mrb[0].mxu0
    %942 = vdwg.mxu0
    %v943 = vpack.c.bf16 %v940, %v937
    %v944 = vld [vmem:[#allocation10] sm:$0xf]
    %v945 = vld [vmem:[#allocation10 + $0x4] sm:$0xf]
    %v946 = vld [vmem:[#allocation10 + $0x8] sm:$0xf]
    %v947 = vld [vmem:[#allocation10 + $0xc] sm:$0xf]
    %v948 = vld [vmem:[#allocation10 + $0x10] sm:$0xf]
    %v949 = vld [vmem:[#allocation10 + $0x14] sm:$0xf]
    %v950 = vld [vmem:[#allocation10 + $0x18] sm:$0xf]
    %v951 = vld [vmem:[#allocation10 + $0x1c] sm:$0xf]
    %v952 = vld [vmem:[#allocation10 + $0x20] sm:$0xf]
    %v953 = vld [vmem:[#allocation10 + $0x24] sm:$0xf]
    %v954 = vld [vmem:[#allocation10 + $0x28] sm:$0xf]
    %v955 = vld [vmem:[#allocation10 + $0x2c] sm:$0xf]
    %v956 = vld [vmem:[#allocation10 + $0x30] sm:$0xf]
    %v957 = vld [vmem:[#allocation10 + $0x34] sm:$0xf]
    %v958 = vld [vmem:[#allocation10 + $0x38] sm:$0xf]
    %v959 = vld [vmem:[#allocation10 + $0x3c] sm:$0xf]
    %v960 = vld [vmem:[%s7] sm:$0x1]
    %v962 = vlaneseq
    %v963 = vshrl.u32 %v962, 7
    %v964 = vsub.s32 0, %v963
    %v965 = vrot.slane %v960, %v964
    %v983 = vunpack.c.l.b16 %v944
    %v984 = vunpack.c.l.b16 %v945
    %v985 = vunpack.c.l.b16 %v946
    %v986 = vunpack.c.l.b16 %v947
    %v987 = vunpack.c.l.b16 %v948
    %v988 = vunpack.c.l.b16 %v949
    %v989 = vunpack.c.l.b16 %v950
    %v990 = vunpack.c.l.b16 %v951
    %v991 = vunpack.c.l.b16 %v952
    %v992 = vunpack.c.l.b16 %v953
    %v993 = vunpack.c.l.b16 %v954
    %v994 = vunpack.c.l.b16 %v955
    %v995 = vunpack.c.l.b16 %v956
    %v996 = vunpack.c.l.b16 %v957
    %v997 = vunpack.c.l.b16 %v958
    %v998 = vunpack.c.l.b16 %v959
    %v999 = vpack.c.b16 %v984, %v983
    %v1000 = vpack.c.b16 %v986, %v985
    %v1001 = vpack.c.b16 %v988, %v987
    %v1002 = vpack.c.b16 %v990, %v989
    %v1003 = vpack.c.b16 %v992, %v991
    %v1004 = vpack.c.b16 %v994, %v993
    %v1005 = vpack.c.b16 %v996, %v995
    %v1006 = vpack.c.b16 %v998, %v997
    %1015 = vmatprep.subr.bf16.mxu0 0
    %1016 = vmatpush1.bf16.msra.mxu0 %v999
    %1017 = vmatprep.subr.bf16.mxu0 0
    %1018 = vmatpush1.bf16.msra.mxu0 %v1000
    %1019 = vmatprep.subr.bf16.mxu0 0
    %1020 = vmatpush1.bf16.msra.mxu0 %v1001
    %1021 = vmatprep.subr.bf16.mxu0 0
    %1022 = vmatpush1.bf16.msra.mxu0 %v1002
    %1023 = vmatprep.subr.bf16.mxu0 0
    %1024 = vmatpush1.bf16.msra.mxu0 %v1003
    %1025 = vmatprep.subr.bf16.mxu0 0
    %1026 = vmatpush1.bf16.msra.mxu0 %v1004
    %1027 = vmatprep.subr.bf16.mxu0 0
    %1028 = vmatpush1.bf16.msra.mxu0 %v1005
    %1029 = vmatprep.subr.bf16.mxu0 0
    %1030 = vmatpush1.bf16.msra.mxu0 %v1006
    %1031 = vmatprep.subr.bf16.mxu0 0
    %1032 = vmatpush1.bf16.msra.mxu0 0
    %1033 = vmatprep.subr.bf16.mxu0 0
    %1034 = vmatpush1.bf16.msra.mxu0 0
    %1035 = vmatprep.subr.bf16.mxu0 0
    %1036 = vmatpush1.bf16.msra.mxu0 0
    %1037 = vmatprep.subr.bf16.mxu0 0
    %1038 = vmatpush1.bf16.msra.mxu0 0
    %1039 = vmatprep.subr.bf16.mxu0 0
    %1040 = vmatpush1.bf16.msra.mxu0 0
    %1041 = vmatprep.subr.bf16.mxu0 0
    %1042 = vmatpush1.bf16.msra.mxu0 0
    %1043 = vmatprep.subr.bf16.mxu0 0
    %1044 = vmatpush1.bf16.msra.mxu0 0
    %1045 = vmatprep.subr.bf16.mxu0 0
    %1046 = vmatpush1.bf16.msra.mxu0 0
    %1047 = vmatprep.mubr.bf16.mxu0 0
    %1048 = vmatmul.mubr.bf16.gmra.mrb[0].mxu0 %v943
    %v1049 = vpop.f32.mrb[0].mxu0
    %v1050 = vadd.f32 %v965, %v1049
    %v1051 = vpop.f32.mrb[0].mxu0
    %v1052 = vpop.f32.mrb[0].mxu0
    %v1053 = vadd.f32 %v965, %v1052
    %v1054 = vpop.f32.mrb[0].mxu0
    %1055 = vdwg.mxu0
    %v1056 = vld [vmem:[#allocation5] sm:$0xff]
    %v1057 = vld [vmem:[#allocation5 + $0x8] sm:$0xff]
    %v1058 = vld [vmem:[#allocation5 + $0x10] sm:$0xff]
    %v1059 = vld [vmem:[#allocation5 + $0x18] sm:$0xff]
    %v1060 = vld [vmem:[#allocation5 + $0x20] sm:$0xff]
    %v1061 = vld [vmem:[#allocation5 + $0x28] sm:$0xff]
    %v1062 = vld [vmem:[#allocation5 + $0x30] sm:$0xff]
    %v1063 = vld [vmem:[#allocation5 + $0x38] sm:$0xff]
    %v1072 = vunpack.c.l.b16 %v1056
    %v1073 = vunpack.c.h.b16 %v1056
    %v1074 = vunpack.c.l.b16 %v1057
    %v1075 = vunpack.c.h.b16 %v1057
    %v1076 = vunpack.c.l.b16 %v1058
    %v1077 = vunpack.c.h.b16 %v1058
    %v1078 = vunpack.c.l.b16 %v1059
    %v1079 = vunpack.c.h.b16 %v1059
    %v1080 = vunpack.c.l.b16 %v1060
    %v1081 = vunpack.c.h.b16 %v1060
    %v1082 = vunpack.c.l.b16 %v1061
    %v1083 = vunpack.c.h.b16 %v1061
    %v1084 = vunpack.c.l.b16 %v1062
    %v1085 = vunpack.c.h.b16 %v1062
    %v1086 = vunpack.c.l.b16 %v1063
    %v1087 = vunpack.c.h.b16 %v1063
    %v1088 = vpack.c.b16 %v1080, %v1072
    %v1089 = vpack.c.b16 %v1081, %v1073
    %v1090 = vpack.c.b16 %v1082, %v1074
    %v1091 = vpack.c.b16 %v1083, %v1075
    %v1092 = vpack.c.b16 %v1084, %v1076
    %v1093 = vpack.c.b16 %v1085, %v1077
    %v1094 = vpack.c.b16 %v1086, %v1078
    %v1095 = vpack.c.b16 %v1087, %v1079
    %1104 = vmatprep.subr.bf16.mxu0 0
    %1105 = vmatpush1.bf16.msra.mxu0 %v538
    %1106 = vmatprep.subr.bf16.mxu0 0
    %1107 = vmatpush1.bf16.msra.mxu0 %v539
    %1108 = vmatprep.subr.bf16.mxu0 0
    %1109 = vmatpush1.bf16.msra.mxu0 %v540
    %1110 = vmatprep.subr.bf16.mxu0 0
    %1111 = vmatpush1.bf16.msra.mxu0 %v541
    %1112 = vmatprep.subr.bf16.mxu0 0
    %1113 = vmatpush1.bf16.msra.mxu0 %v542
    %1114 = vmatprep.subr.bf16.mxu0 0
    %1115 = vmatpush1.bf16.msra.mxu0 %v543
    %1116 = vmatprep.subr.bf16.mxu0 0
    %1117 = vmatpush1.bf16.msra.mxu0 %v544
    %1118 = vmatprep.subr.bf16.mxu0 0
    %1119 = vmatpush1.bf16.msra.mxu0 %v545
    %1120 = vmatprep.subr.bf16.mxu0 0
    %1121 = vmatpush1.bf16.msra.mxu0 %v546
    %1122 = vmatprep.subr.bf16.mxu0 0
    %1123 = vmatpush1.bf16.msra.mxu0 %v547
    %1124 = vmatprep.subr.bf16.mxu0 0
    %1125 = vmatpush1.bf16.msra.mxu0 %v548
    %1126 = vmatprep.subr.bf16.mxu0 0
    %1127 = vmatpush1.bf16.msra.mxu0 %v549
    %1128 = vmatprep.subr.bf16.mxu0 0
    %1129 = vmatpush1.bf16.msra.mxu0 %v550
    %1130 = vmatprep.subr.bf16.mxu0 0
    %1131 = vmatpush1.bf16.msra.mxu0 %v551
    %1132 = vmatprep.subr.bf16.mxu0 0
    %1133 = vmatpush1.bf16.msra.mxu0 %v552
    %1134 = vmatprep.subr.bf16.mxu0 0
    %1135 = vmatpush1.bf16.msra.mxu0 %v553
    %1136 = vmatprep.mubr.bf16.mxu0 %v1089
    %1137 = vmatmul.mubr.bf16.gmra.mrb[0].mxu0 %v1088
    %v1138 = vpop.f32.mrb[0].mxu0
    %v1139 = vadd.f32 %v240, %v1138
    %v1140 = vpop.f32.mrb[0].mxu0
    %v1141 = vpop.f32.mrb[0].mxu0
    %v1142 = vadd.f32 %v240, %v1141
    %v1143 = vpop.f32.mrb[0].mxu0
    %1144 = vdwg.mxu0
    %1145 = vmatprep.subr.bf16.mxu0 0
    %1146 = vmatpush1.bf16.msra.mxu0 %v554
    %1147 = vmatprep.subr.bf16.mxu0 0
    %1148 = vmatpush1.bf16.msra.mxu0 %v555
    %1149 = vmatprep.subr.bf16.mxu0 0
    %1150 = vmatpush1.bf16.msra.mxu0 %v556
    %1151 = vmatprep.subr.bf16.mxu0 0
    %1152 = vmatpush1.bf16.msra.mxu0 %v557
    %1153 = vmatprep.subr.bf16.mxu0 0
    %1154 = vmatpush1.bf16.msra.mxu0 %v558
    %1155 = vmatprep.subr.bf16.mxu0 0
    %1156 = vmatpush1.bf16.msra.mxu0 %v559
    %1157 = vmatprep.subr.bf16.mxu0 0
    %1158 = vmatpush1.bf16.msra.mxu0 %v560
    %1159 = vmatprep.subr.bf16.mxu0 0
    %1160 = vmatpush1.bf16.msra.mxu0 %v561
    %1161 = vmatprep.subr.bf16.mxu0 0
    %1162 = vmatpush1.bf16.msra.mxu0 %v562
    %1163 = vmatprep.subr.bf16.mxu0 0
    %1164 = vmatpush1.bf16.msra.mxu0 %v563
    %1165 = vmatprep.subr.bf16.mxu0 0
    %1166 = vmatpush1.bf16.msra.mxu0 %v564
    %1167 = vmatprep.subr.bf16.mxu0 0
    %1168 = vmatpush1.bf16.msra.mxu0 %v565
    %1169 = vmatprep.subr.bf16.mxu0 0
    %1170 = vmatpush1.bf16.msra.mxu0 %v566
    %1171 = vmatprep.subr.bf16.mxu0 0
    %1172 = vmatpush1.bf16.msra.mxu0 %v567
    %1173 = vmatprep.subr.bf16.mxu0 0
    %1174 = vmatpush1.bf16.msra.mxu0 %v568
    %1175 = vmatprep.subr.bf16.mxu0 0
    %1176 = vmatpush1.bf16.msra.mxu0 %v569
    %1177 = vmatprep.mubr.bf16.mxu0 %v1091
    %1178 = vmatmul.mubr.bf16.gmra.mrb[0].mxu0 %v1090
    %v1179 = vpop.f32.mrb[0].mxu0
    %v1180 = vadd.f32 %v1139, %v1179
    %v1181 = vpop.f32.mrb[0].mxu0
    %v1182 = vpop.f32.mrb[0].mxu0
    %v1183 = vadd.f32 %v1142, %v1182
    %v1184 = vpop.f32.mrb[0].mxu0
    %1185 = vdwg.mxu0
    %1186 = vmatprep.subr.bf16.mxu0 0
    %1187 = vmatpush1.bf16.msra.mxu0 %v570
    %1188 = vmatprep.subr.bf16.mxu0 0
    %1189 = vmatpush1.bf16.msra.mxu0 %v571
    %1190 = vmatprep.subr.bf16.mxu0 0
    %1191 = vmatpush1.bf16.msra.mxu0 %v572
    %1192 = vmatprep.subr.bf16.mxu0 0
    %1193 = vmatpush1.bf16.msra.mxu0 %v573
    %1194 = vmatprep.subr.bf16.mxu0 0
    %1195 = vmatpush1.bf16.msra.mxu0 %v574
    %1196 = vmatprep.subr.bf16.mxu0 0
    %1197 = vmatpush1.bf16.msra.mxu0 %v575
    %1198 = vmatprep.subr.bf16.mxu0 0
    %1199 = vmatpush1.bf16.msra.mxu0 %v576
    %1200 = vmatprep.subr.bf16.mxu0 0
    %1201 = vmatpush1.bf16.msra.mxu0 %v577
    %1202 = vmatprep.subr.bf16.mxu0 0
    %1203 = vmatpush1.bf16.msra.mxu0 %v578
    %1204 = vmatprep.subr.bf16.mxu0 0
    %1205 = vmatpush1.bf16.msra.mxu0 %v579
    %1206 = vmatprep.subr.bf16.mxu0 0
    %1207 = vmatpush1.bf16.msra.mxu0 %v580
    %1208 = vmatprep.subr.bf16.mxu0 0
    %1209 = vmatpush1.bf16.msra.mxu0 %v581
    %1210 = vmatprep.subr.bf16.mxu0 0
    %1211 = vmatpush1.bf16.msra.mxu0 %v582
    %1212 = vmatprep.subr.bf16.mxu0 0
    %1213 = vmatpush1.bf16.msra.mxu0 %v583
    %1214 = vmatprep.subr.bf16.mxu0 0
    %1215 = vmatpush1.bf16.msra.mxu0 %v584
    %1216 = vmatprep.subr.bf16.mxu0 0
    %1217 = vmatpush1.bf16.msra.mxu0 %v585
    %1218 = vmatprep.mubr.bf16.mxu0 %v1093
    %1219 = vmatmul.mubr.bf16.gmra.mrb[0].mxu0 %v1092
    %v1220 = vpop.f32.mrb[0].mxu0
    %v1221 = vadd.f32 %v1180, %v1220
    %v1222 = vpop.f32.mrb[0].mxu0
    %v1223 = vpop.f32.mrb[0].mxu0
    %v1224 = vadd.f32 %v1183, %v1223
    %v1225 = vpop.f32.mrb[0].mxu0
    %1226 = vdwg.mxu0
    %1227 = vmatprep.subr.bf16.mxu0 0
    %1228 = vmatpush1.bf16.msra.mxu0 %v586
    %1229 = vmatprep.subr.bf16.mxu0 0
    %1230 = vmatpush1.bf16.msra.mxu0 %v587
    %1231 = vmatprep.subr.bf16.mxu0 0
    %1232 = vmatpush1.bf16.msra.mxu0 %v588
    %1233 = vmatprep.subr.bf16.mxu0 0
    %1234 = vmatpush1.bf16.msra.mxu0 %v589
    %1235 = vmatprep.subr.bf16.mxu0 0
    %1236 = vmatpush1.bf16.msra.mxu0 %v590
    %1237 = vmatprep.subr.bf16.mxu0 0
    %1238 = vmatpush1.bf16.msra.mxu0 %v591
    %1239 = vmatprep.subr.bf16.mxu0 0
    %1240 = vmatpush1.bf16.msra.mxu0 %v592
    %1241 = vmatprep.subr.bf16.mxu0 0
    %1242 = vmatpush1.bf16.msra.mxu0 %v593
    %1243 = vmatprep.subr.bf16.mxu0 0
    %1244 = vmatpush1.bf16.msra.mxu0 %v594
    %1245 = vmatprep.subr.bf16.mxu0 0
    %1246 = vmatpush1.bf16.msra.mxu0 %v595
    %1247 = vmatprep.subr.bf16.mxu0 0
    %1248 = vmatpush1.bf16.msra.mxu0 %v596
    %1249 = vmatprep.subr.bf16.mxu0 0
    %1250 = vmatpush1.bf16.msra.mxu0 %v597
    %1251 = vmatprep.subr.bf16.mxu0 0
    %1252 = vmatpush1.bf16.msra.mxu0 %v598
    %1253 = vmatprep.subr.bf16.mxu0 0
    %1254 = vmatpush1.bf16.msra.mxu0 %v599
    %1255 = vmatprep.subr.bf16.mxu0 0
    %1256 = vmatpush1.bf16.msra.mxu0 %v600
    %1257 = vmatprep.subr.bf16.mxu0 0
    %1258 = vmatpush1.bf16.msra.mxu0 %v601
    %1259 = vmatprep.mubr.bf16.mxu0 %v1095
    %1260 = vmatmul.mubr.bf16.gmra.mrb[0].mxu0 %v1094
    %v1261 = vpop.f32.mrb[0].mxu0
    %v1262 = vadd.f32 %v1221, %v1261
    %v1263 = vpop.f32.mrb[0].mxu0
    %v1264 = vpop.f32.mrb[0].mxu0
    %v1265 = vadd.f32 %v1224, %v1264
    %v1266 = vpop.f32.mrb[0].mxu0
    %1267 = vdwg.mxu0
    %v1268 = vpack.c.bf16 %v1265, %v1262
    %1269 = vmatprep.subr.bf16.mxu0 0
    %1270 = vmatpush1.bf16.msra.mxu0 %v886
    %1271 = vmatprep.subr.bf16.mxu0 0
    %1272 = vmatpush1.bf16.msra.mxu0 %v887
    %1273 = vmatprep.subr.bf16.mxu0 0
    %1274 = vmatpush1.bf16.msra.mxu0 %v888
    %1275 = vmatprep.subr.bf16.mxu0 0
    %1276 = vmatpush1.bf16.msra.mxu0 %v889
    %1277 = vmatprep.subr.bf16.mxu0 0
    %1278 = vmatpush1.bf16.msra.mxu0 %v890
    %1279 = vmatprep.subr.bf16.mxu0 0
    %1280 = vmatpush1.bf16.msra.mxu0 %v891
    %1281 = vmatprep.subr.bf16.mxu0 0
    %1282 = vmatpush1.bf16.msra.mxu0 %v892
    %1283 = vmatprep.subr.bf16.mxu0 0
    %1284 = vmatpush1.bf16.msra.mxu0 %v893
    %1285 = vmatprep.subr.bf16.mxu0 0
    %1286 = vmatpush1.bf16.msra.mxu0 0
    %1287 = vmatprep.subr.bf16.mxu0 0
    %1288 = vmatpush1.bf16.msra.mxu0 0
    %1289 = vmatprep.subr.bf16.mxu0 0
    %1290 = vmatpush1.bf16.msra.mxu0 0
    %1291 = vmatprep.subr.bf16.mxu0 0
    %1292 = vmatpush1.bf16.msra.mxu0 0
    %1293 = vmatprep.subr.bf16.mxu0 0
    %1294 = vmatpush1.bf16.msra.mxu0 0
    %1295 = vmatprep.subr.bf16.mxu0 0
    %1296 = vmatpush1.bf16.msra.mxu0 0
    %1297 = vmatprep.subr.bf16.mxu0 0
    %1298 = vmatpush1.bf16.msra.mxu0 0
    %1299 = vmatprep.subr.bf16.mxu0 0
    %1300 = vmatpush1.bf16.msra.mxu0 0
    %1301 = vmatprep.mubr.bf16.mxu0 0
    %1302 = vmatmul.mubr.bf16.gmra.mrb[0].mxu0 %v1268
    %v1303 = vpop.f32.mrb[0].mxu0
    %v1304 = vadd.f32 %v852, %v1303
    %v1305 = vpop.f32.mrb[0].mxu0
    %v1306 = vpop.f32.mrb[0].mxu0
    %v1307 = vadd.f32 %v852, %v1306
    %v1308 = vpop.f32.mrb[0].mxu0
    %1309 = vdwg.mxu0
    %v1310 = vmul.f32 %v1050, %v1050
    %v1311 = vmul.f32 %v1053, %v1053
    %1312 = vadd.xlane.f32.xlu0 %v1310
    %v1313 = vpop.xlane.xlu0 %1312
    %1314 = vadd.xlane.f32.xlu0 %v1311
    %v1315 = vpop.xlane.xlu0 %1314
    %v1316 = vmax.f32 %v1313, 1e-24
    %v1317 = vmax.f32 %v1315, 1e-24
    %v1318 = vrsqrt.pop %v1316
    %v1319 = vrsqrt.pop %v1317
    %v1320 = vmul.f32 %v1050, %v1318
    %v1321 = vmul.f32 %v1053, %v1319
    %v1322 = vmul.f32 %v1304, %v1304
    %v1323 = vmul.f32 %v1307, %v1307
    %1324 = vadd.xlane.f32.xlu0 %v1322
    %v1325 = vpop.xlane.xlu0 %1324
    %1326 = vadd.xlane.f32.xlu0 %v1323
    %v1327 = vpop.xlane.xlu0 %1326
    %v1328 = vmax.f32 %v1325, 1e-24
    %v1329 = vmax.f32 %v1327, 1e-24
    %v1330 = vrsqrt.pop %v1328
    %v1331 = vrsqrt.pop %v1329
    %v1332 = vmul.f32 %v1304, %v1330
    %v1333 = vmul.f32 %v1307, %v1331
    %v1334 = vsub.f32 %v1320, %v1332
    %v1335 = vsub.f32 %v1321, %v1333
    %v1336 = vlaneseq
    %v1337 = vshrl.u32 %v1336, 7
    %v1338 = vadd.s32 %v1337, 8
    %vm1339 = vcmp.lt.s32.totalorder %v1337, 2
    %vm1340 = vcmp.lt.s32.totalorder %v1338, 2
    %v1341 = vsel %vm1339, %v1334, 0.0
    %v1342 = vsel %vm1340, %v1335, 0.0
    %v1343 = vmul.f32 %v1341, %v1341
    %v1344 = vmul.f32 %v1342, %v1342
    %v1345 = vadd.f32 %v1343, %v1344
    %1346 = vadd.xlane.f32.xlu0 %v1345
    %v1347 = vpop.xlane.xlu0 %1346
    %v1348 = vrot.slane %v1347, 4
    %v1349 = vadd.f32 %v1347, %v1348
    %v1350 = vrot.slane %v1349, 2
    %v1351 = vadd.f32 %v1349, %v1350
    %v1352 = vrot.slane %v1351, 1
    %v1353 = vadd.f32 %v1351, %v1352
    %s1354 = vtos %v1353
    %s1355 = scalar_lea.smem [#allocation11], 0
    %1356 = sst [smem:[%s1355]] %s1354
    // Predicated region
    $region54: #{tpu_custom_call.1} parent=1 // pred_check
      _
    $region55: #{tpu_custom_call.1} parent=1 // pred_check_branch
      %1358 = sbr.rel (0) target = $region57
    $region56: #{tpu_custom_call.1} parent=1 // pred_region
      %s1360 = ssub.s32 16, 16
      %1361 = vsyncadd [#allocation4], %s1360
      %1364 = dma.smem_to_hbm [#allocation11], 16, %s8, [#allocation4]
    $region57: #{tpu_custom_call.1} parent=1 // pred_fallthru
      _
    // Predicated region
    $region58: #{tpu_custom_call.1} parent=1 // pred_check
      _
    $region59: #{tpu_custom_call.1} parent=1 // pred_check_branch
      %1366 = sbr.rel (0) target = $region61
    $region60: #{tpu_custom_call.1} parent=1 // pred_region
      %1367 = dma.done [#allocation4], 16
    $region61: #{tpu_custom_call.1} parent=1 // pred_fallthru
      _
    %1368 = sfence
    %1369 = vsyncpa [#allocation3], 1
    %1370 = vsyncpa [#allocation6], 1
    %1371 = vsyncpa [#allocation9], 1
    %1372 = vsyncpa [#allocation4], 1

</llo_original>
